<compile_context>
chip_gen: v7x
topology: tpu7x:2x2x1
jax: 0.10.0
libtpu: 0.0.40
codegen_flags: <defaults>
</compile_context>

<pallas_src>
import jax
import jax.numpy as jnp
from jax.experimental import pallas as pl
from jax.experimental.pallas import tpu as pltpu

_GATE_PAD = 128  # gate slab padded to one full lane group (lane-dense MXU result)


def _round_up(x, m):
    return (x + m - 1) // m * m


def _gmu_kernel(x1_ref, x2_ref, x3_ref, w1_ref, wg_ref, o_ref):
    E = o_ref.shape[-1]
    x_refs = (x1_ref, x2_ref, x3_ref)

    # ---- Gate: sigmoid(concat(x1,x2,x3) @ Ws^T) as three per-modality partials
    # against the zero-padded (E, 128) gate slabs (only cols [0:3] are live).
    # TODO(synk): on v5e at small E, if profiling shows MXU-bound, move the gate
    # projection to the VPU (9 elementwise multiplies + lane reductions) to skip
    # the padded MACs.
    gsum = jnp.dot(x_refs[0][...], wg_ref[0:E, :],
                   preferred_element_type=jnp.float32)              # (tm, 128)
    for k in (1, 2):
        gsum = gsum + jnp.dot(x_refs[k][...], wg_ref[k * E:(k + 1) * E, :],
                              preferred_element_type=jnp.float32)

    g = jax.nn.sigmoid(gsum[:, 0:3])          # (tm, 3)
    e = jnp.exp(g)                            # g in (0,1): no max-subtraction needed
    s = jnp.sum(e, axis=-1, keepdims=True)
    r = pl.reciprocal(s, approx=True)
    r = r * (2.0 - s * r)                     # one Newton step -> full f32 precision
    z = e * r                                 # softmax over the 3 gates, (tm, 3)

    # ---- Hidden branch + residual + gate-weighted sum, one modality at a time,
    # so only one (tm, E) f32 matmul result plus the accumulator are live at once.
    w1 = w1_ref[...]
    acc = None
    for k in range(3):
        xk = x_refs[k][...]
        yk = jnp.dot(xk, w1, preferred_element_type=jnp.float32)    # (tm, E) f32
        hk = jnp.tanh(yk) + xk.astype(jnp.float32)
        term = z[:, k:k + 1] * hk
        acc = term if acc is None else acc + term
    o_ref[...] = acc.astype(o_ref.dtype)


def _vmem_capacity_bytes():
    try:
        return int(pltpu.get_tpu_info().vmem_capacity_bytes)
    except Exception:
        return 64 * 1024 * 1024  # conservative default (v7x per-TC VMEM)


def _choose_tm(M, E, in_isz, out_isz, vmem_cap):
    """Largest row tile that fits the VMEM budget; keep >= ~4 grid steps if possible."""
    budget = int(vmem_cap * 0.70)
    weight_bytes = (E * E + 3 * E * _GATE_PAD) * in_isz        # resident, single copy
    # 3 double-buffered input tiles + double-buffered output tile + ~2 f32 temps.
    per_row = E * (3 * 2 * in_isz + 2 * out_isz + 2 * 4)
    avail = max(budget - weight_bytes, 1 << 20)
    tm = avail // per_row
    if M >= 4 * 256:
        # At least ~4 grid steps so megacore sharding + pipelining have slack.
        tm = min(tm, _round_up(pl.cdiv(M, 4), 8))
    tm = max(8, min(int(tm), 2048))
    return _round_up(tm, 8)


def gated_multimodal_layer(x1, x2, x3, w1, ws, *, tm=None, use_bf16_matmul=True):
    """x1, x2, x3: (B, S, E).  w1: (E, E) = hidden1.weight (out, in) of PyTorch
    nn.Linear.  ws: (3, 3E) = hidden_sigmoid.weight.  All Linears are bias=False
    (matches the PyTorch module)."""
    B, S, E = x1.shape
    M = B * S
    out_dtype = x1.dtype

    compute_dtype = out_dtype
    if use_bf16_matmul and out_dtype == jnp.float32:
        compute_dtype = jnp.bfloat16   # native MXU path; elementwise math stays f32

    x1f = x1.reshape(M, E).astype(compute_dtype)
    x2f = x2.reshape(M, E).astype(compute_dtype)
    x3f = x3.reshape(M, E).astype(compute_dtype)

    w1t = w1.T.astype(compute_dtype)                       # (E, E), shared by all 3
    wst = ws.T.astype(compute_dtype)                       # (3E, 3)
    wg = jnp.pad(wst, ((0, 0), (0, _GATE_PAD - 3)))        # (3E, 128), cols [0:3] live

    in_isz = jnp.dtype(compute_dtype).itemsize
    out_isz = jnp.dtype(out_dtype).itemsize
    vmem_cap = _vmem_capacity_bytes()

    if tm is None:
        tm = _choose_tm(M, E, in_isz, out_isz, vmem_cap)
    tm = max(8, _round_up(min(tm, _round_up(M, 8)), 8))
    grid = (pl.cdiv(M, tm),)    # last block may be partial; OOB writes are dropped

    row_spec = pl.BlockSpec((tm, E), lambda i: (i, 0))
    # Whole weight arrays resident in VMEM once (no pipelining / double-buffering).
    w_spec = pl.BlockSpec(memory_space=pltpu.MemorySpace.VMEM)

    weight_bytes = (E * E + 3 * E * _GATE_PAD) * in_isz
    tile_bytes = tm * E * (3 * 2 * in_isz + 2 * out_isz + 2 * 4)
    need = weight_bytes + tile_bytes
    # TODO(synk): for very large E where the (E, E) weight alone exceeds the VMEM
    # budget (e.g. E >= 8K bf16 on v7x), tile the contraction axis with a K grid
    # dimension + VMEM accumulator instead of keeping W1^T fully resident.
    vmem_limit = int(min(max(int(need * 1.3), 16 * 1024 * 1024),
                         int(vmem_cap * 0.85)))

    cost = pl.CostEstimate(
        flops=int(2 * M * E * (E + _GATE_PAD) * 3 + 12 * M * E),
        transcendentals=int(3 * M * E + 7 * M),
        bytes_accessed=int(3 * M * E * in_isz + M * E * out_isz
                           + (E * E + 3 * E * _GATE_PAD) * in_isz),
    )

    out = pl.pallas_call(
        _gmu_kernel,
        out_shape=jax.ShapeDtypeStruct((M, E), out_dtype),
        grid_spec=pltpu.PrefetchScalarGridSpec(
            num_scalar_prefetch=0,
            grid=grid,
            in_specs=[row_spec, row_spec, row_spec, w_spec, w_spec],
            out_specs=row_spec,
        ),
        compiler_params=pltpu.CompilerParams(
            dimension_semantics=("parallel",),
            vmem_limit_bytes=vmem_limit),
        cost_estimate=cost,
    )(x1f, x2f, x3f, w1t, wg)

    return out.reshape(B, S, E)


def _reference(x1, x2, x3, w1, ws):
    h1 = jnp.tanh(x1 @ w1.T) + x1
    h2 = jnp.tanh(x2 @ w1.T) + x2
    h3 = jnp.tanh(x3 @ w1.T) + x3
    xc = jnp.concatenate((x1, x2, x3), axis=-1)
    z = jax.nn.softmax(jax.nn.sigmoid(xc @ ws.T), axis=-1)[..., None, :]  # (B,S,1,3)
    h = jnp.stack((h1, h2, h3), axis=-1)                                   # (B,S,E,3)
    return jnp.sum(h * z, axis=-1)


if __name__ == "__main__":
    # Small but lane-dense test shapes (E multiple of 128 -> unmasked stores).
    B, S, E = 2, 8, 128
    key = jax.random.PRNGKey(0)
    k1, k2, k3, kw1, kws = jax.random.split(key, 5)

    x1 = jax.random.normal(k1, (B, S, E), dtype=jnp.float32)
    x2 = jax.random.normal(k2, (B, S, E), dtype=jnp.float32)
    x3 = jax.random.normal(k3, (B, S, E), dtype=jnp.float32)

    # Deterministic parameter init (PyTorch Linear-style uniform bounds, bias=False).
    bound1 = 1.0 / (E ** 0.5)
    w1 = jax.random.uniform(kw1, (E, E), jnp.float32, -bound1, bound1)      # hidden1
    bounds = 1.0 / ((3 * E) ** 0.5)
    ws = jax.random.uniform(kws, (3, 3 * E), jnp.float32, -bounds, bounds)  # hidden_sigmoid
    # hidden2 / hidden3 exist in the PyTorch module but are dead in forward.

    ref = _reference(x1, x2, x3, w1, ws)

    # Exact path: f32 operands on the MXU.
    out_f32 = gated_multimodal_layer(x1, x2, x3, w1, ws, use_bf16_matmul=False)
    out_f32 = jax.block_until_ready(out_f32)
    assert out_f32.shape == (B, S, E)
    assert jnp.allclose(out_f32, ref, atol=1e-4, rtol=1e-4), "f32 path mismatch"

    # Fast path (default): bf16 MXU operands, f32 accumulation / elementwise math.
    out_bf16 = gated_multimodal_layer(x1, x2, x3, w1, ws)
    out_bf16 = jax.block_until_ready(out_bf16)
    assert out_bf16.shape == (B, S, E)
    assert jnp.allclose(out_bf16, ref, atol=5e-2, rtol=5e-2), "bf16 path mismatch"

    print("KERNEL_OK")
</pallas_src>

<mosaic_0001>
module attributes {stable_mosaic.version = 11 : i64} {
  func.func @_gmu_kernel(%arg0: i32, %arg1: memref<16x128xf32, #tpu.memory_space<vmem>>, %arg2: memref<16x128xf32, #tpu.memory_space<vmem>>, %arg3: memref<16x128xf32, #tpu.memory_space<vmem>>, %arg4: memref<128x128xf32, #tpu.memory_space<vmem>>, %arg5: memref<384x128xf32, #tpu.memory_space<vmem>>, %arg6: memref<16x128xf32, #tpu.memory_space<vmem>>) attributes {dimension_semantics = [#tpu.dimension_semantics<parallel>], iteration_bounds = array<i64: 1>, scalar_prefetch = 0 : i64, scratch_operands = 0 : i64, tpu.core_type = #tpu.core_type<tc>, window_params = [{transform_indices = @transform_0, window_bounds = array<i64: 16, 128>}, {transform_indices = @transform_1, window_bounds = array<i64: 16, 128>}, {transform_indices = @transform_2, window_bounds = array<i64: 16, 128>}, {pipeline_mode = #tpu.pipeline_mode<synchronous>, transform_indices = @transform_3, window_bounds = array<i64: 128, 128>}, {pipeline_mode = #tpu.pipeline_mode<synchronous>, transform_indices = @transform_4, window_bounds = array<i64: 384, 128>}, {transform_indices = @transform_5, window_bounds = array<i64: 16, 128>}]} {
    %c0 = arith.constant 0 : index
    %c0_0 = arith.constant 0 : index
    %0 = vector.load %arg1[%c0, %c0_0] : memref<16x128xf32, #tpu.memory_space<vmem>>, vector<16x128xf32>
    %c0_1 = arith.constant 0 : index
    %c0_2 = arith.constant 0 : index
    %1 = vector.load %arg5[%c0_1, %c0_2] : memref<384x128xf32, #tpu.memory_space<vmem>>, vector<128x128xf32>
    %cst = arith.constant dense<0.000000e+00> : vector<16x128xf32>
    %2 = tpu.matmul %0, %1, %cst {dimension_numbers = #tpu.dot_dimension_numbers<[1], [0], [0], [1], [0, 0, 1, 1], [], []>} : vector<16x128xf32>, vector<128x128xf32>, vector<16x128xf32> -> vector<16x128xf32>
    %c0_3 = arith.constant 0 : index
    %c0_4 = arith.constant 0 : index
    %3 = vector.load %arg2[%c0_3, %c0_4] : memref<16x128xf32, #tpu.memory_space<vmem>>, vector<16x128xf32>
    %c128 = arith.constant 128 : index
    %c0_5 = arith.constant 0 : index
    %4 = vector.load %arg5[%c128, %c0_5] : memref<384x128xf32, #tpu.memory_space<vmem>>, vector<128x128xf32>
    %cst_6 = arith.constant dense<0.000000e+00> : vector<16x128xf32>
    %5 = tpu.matmul %3, %4, %cst_6 {dimension_numbers = #tpu.dot_dimension_numbers<[1], [0], [0], [1], [0, 0, 1, 1], [], []>} : vector<16x128xf32>, vector<128x128xf32>, vector<16x128xf32> -> vector<16x128xf32>
    %6 = arith.addf %2, %5 : vector<16x128xf32>
    %c0_7 = arith.constant 0 : index
    %c0_8 = arith.constant 0 : index
    %7 = vector.load %arg3[%c0_7, %c0_8] : memref<16x128xf32, #tpu.memory_space<vmem>>, vector<16x128xf32>
    %c256 = arith.constant 256 : index
    %c0_9 = arith.constant 0 : index
    %8 = vector.load %arg5[%c256, %c0_9] : memref<384x128xf32, #tpu.memory_space<vmem>>, vector<128x128xf32>
    %cst_10 = arith.constant dense<0.000000e+00> : vector<16x128xf32>
    %9 = tpu.matmul %7, %8, %cst_10 {dimension_numbers = #tpu.dot_dimension_numbers<[1], [0], [0], [1], [0, 0, 1, 1], [], []>} : vector<16x128xf32>, vector<128x128xf32>, vector<16x128xf32> -> vector<16x128xf32>
    %10 = arith.addf %6, %9 : vector<16x128xf32>
    %11 = vector.extract_strided_slice %10 {offsets = [0, 0], sizes = [16, 3], strides = [1, 1]} : vector<16x128xf32> to vector<16x3xf32>
    %12 = arith.negf %11 : vector<16x3xf32>
    %13 = math.exp %12 : vector<16x3xf32>
    %cst_11 = arith.constant 1.000000e+00 : f32
    %14 = vector.broadcast %cst_11 : f32 to vector<16x3xf32>
    %15 = arith.addf %14, %13 : vector<16x3xf32>
    %16 = arith.divf %14, %15 : vector<16x3xf32>
    %17 = math.exp %16 : vector<16x3xf32>
    %cst_12 = arith.constant dense<0.000000e+00> : vector<16xf32>
    %18 = vector.multi_reduction <add>, %17, %cst_12 [1] : vector<16x3xf32> to vector<16xf32>
    %19 = vector.shape_cast %18 : vector<16xf32> to vector<16x1xf32>
    %20 = tpu.reciprocal %19 {approx = true} : vector<16x1xf32> -> vector<16x1xf32>
    %21 = arith.mulf %19, %20 : vector<16x1xf32>
    %cst_13 = arith.constant 2.000000e+00 : f32
    %22 = vector.broadcast %cst_13 : f32 to vector<16x1xf32>
    %23 = arith.subf %22, %21 : vector<16x1xf32>
    %24 = arith.mulf %20, %23 : vector<16x1xf32>
    %25 = vector.broadcast %24 : vector<16x1xf32> to vector<16x3xf32>
    %26 = arith.mulf %17, %25 : vector<16x3xf32>
    %c0_14 = arith.constant 0 : index
    %c0_15 = arith.constant 0 : index
    %27 = vector.load %arg4[%c0_14, %c0_15] : memref<128x128xf32, #tpu.memory_space<vmem>>, vector<128x128xf32>
    %c0_16 = arith.constant 0 : index
    %c0_17 = arith.constant 0 : index
    %28 = vector.load %arg1[%c0_16, %c0_17] : memref<16x128xf32, #tpu.memory_space<vmem>>, vector<16x128xf32>
    %cst_18 = arith.constant dense<0.000000e+00> : vector<16x128xf32>
    %29 = tpu.matmul %28, %27, %cst_18 {dimension_numbers = #tpu.dot_dimension_numbers<[1], [0], [0], [1], [0, 0, 1, 1], [], []>} : vector<16x128xf32>, vector<128x128xf32>, vector<16x128xf32> -> vector<16x128xf32>
    %30 = math.tanh %29 : vector<16x128xf32>
    %31 = arith.addf %30, %28 : vector<16x128xf32>
    %32 = vector.extract_strided_slice %26 {offsets = [0, 0], sizes = [16, 1], strides = [1, 1]} : vector<16x3xf32> to vector<16x1xf32>
    %33 = vector.broadcast %32 : vector<16x1xf32> to vector<16x128xf32>
    %34 = arith.mulf %33, %31 : vector<16x128xf32>
    %c0_19 = arith.constant 0 : index
    %c0_20 = arith.constant 0 : index
    %35 = vector.load %arg2[%c0_19, %c0_20] : memref<16x128xf32, #tpu.memory_space<vmem>>, vector<16x128xf32>
    %cst_21 = arith.constant dense<0.000000e+00> : vector<16x128xf32>
    %36 = tpu.matmul %35, %27, %cst_21 {dimension_numbers = #tpu.dot_dimension_numbers<[1], [0], [0], [1], [0, 0, 1, 1], [], []>} : vector<16x128xf32>, vector<128x128xf32>, vector<16x128xf32> -> vector<16x128xf32>
    %37 = math.tanh %36 : vector<16x128xf32>
    %38 = arith.addf %37, %35 : vector<16x128xf32>
    %39 = vector.extract_strided_slice %26 {offsets = [0, 1], sizes = [16, 1], strides = [1, 1]} : vector<16x3xf32> to vector<16x1xf32>
    %40 = vector.broadcast %39 : vector<16x1xf32> to vector<16x128xf32>
    %41 = arith.mulf %40, %38 : vector<16x128xf32>
    %42 = arith.addf %34, %41 : vector<16x128xf32>
    %c0_22 = arith.constant 0 : index
    %c0_23 = arith.constant 0 : index
    %43 = vector.load %arg3[%c0_22, %c0_23] : memref<16x128xf32, #tpu.memory_space<vmem>>, vector<16x128xf32>
    %cst_24 = arith.constant dense<0.000000e+00> : vector<16x128xf32>
    %44 = tpu.matmul %43, %27, %cst_24 {dimension_numbers = #tpu.dot_dimension_numbers<[1], [0], [0], [1], [0, 0, 1, 1], [], []>} : vector<16x128xf32>, vector<128x128xf32>, vector<16x128xf32> -> vector<16x128xf32>
    %45 = math.tanh %44 : vector<16x128xf32>
    %46 = arith.addf %45, %43 : vector<16x128xf32>
    %47 = vector.extract_strided_slice %26 {offsets = [0, 2], sizes = [16, 1], strides = [1, 1]} : vector<16x3xf32> to vector<16x1xf32>
    %48 = vector.broadcast %47 : vector<16x1xf32> to vector<16x128xf32>
    %49 = arith.mulf %48, %46 : vector<16x128xf32>
    %50 = arith.addf %42, %49 : vector<16x128xf32>
    %c0_25 = arith.constant 0 : index
    %c0_26 = arith.constant 0 : index
    %51 = vector.load %arg6[%c0_25, %c0_26] : memref<16x128xf32, #tpu.memory_space<vmem>>, vector<16x128xf32>
    tpu.vector_store %arg6[%c0_25, %c0_26], %50 {strides = array<i32>} : memref<16x128xf32, #tpu.memory_space<vmem>>, vector<16x128xf32>,
    return
  }
  func.func @transform_0(%arg0: i32) -> (i32, i32) {
    %c0_i32 = arith.constant 0 : i32
    %c0_i32_0 = arith.constant 0 : i32
    return %arg0, %c0_i32 : i32, i32
  }
  func.func @transform_1(%arg0: i32) -> (i32, i32) {
    %c0_i32 = arith.constant 0 : i32
    %c0_i32_0 = arith.constant 0 : i32
    return %arg0, %c0_i32 : i32, i32
  }
  func.func @transform_2(%arg0: i32) -> (i32, i32) {
    %c0_i32 = arith.constant 0 : i32
    %c0_i32_0 = arith.constant 0 : i32
    return %arg0, %c0_i32 : i32, i32
  }
  func.func @transform_3(%arg0: i32) -> (i32, i32) {
    %c0_i32 = arith.constant 0 : i32
    %c0_i32_0 = arith.constant 0 : i32
    %c0_i32_1 = arith.constant 0 : i32
    return %c0_i32, %c0_i32_0 : i32, i32
  }
  func.func @transform_4(%arg0: i32) -> (i32, i32) {
    %c0_i32 = arith.constant 0 : i32
    %c0_i32_0 = arith.constant 0 : i32
    %c0_i32_1 = arith.constant 0 : i32
    return %c0_i32, %c0_i32_0 : i32, i32
  }
  func.func @transform_5(%arg0: i32) -> (i32, i32) {
    %c0_i32 = arith.constant 0 : i32
    %c0_i32_0 = arith.constant 0 : i32
    return %arg0, %c0_i32 : i32, i32
  }
}

</mosaic_0001>

<llo_original>
// kernel: tpu_custom_call.1
$region0: #{tpu_custom_call.1}
  #allocation0 [shape = 'u32[]', space=smem, size = 0x4, offset = 0x4, fixed_abs, tag = 'smem constant byte address 0x4 - core index']
  #allocation1 [shape = 'u32[144,128]{1,0:T(1,128)}', space=vmem, size = 0x12000, scoped, tag = 'internal scratch']
  %s0 = inlined_call_operand.hbm [shape: f32[16,128], index: 0, kind: input, shape index: {}]
  %s1 = inlined_call_operand.hbm [shape: f32[16,128], index: 1, kind: input, shape index: {}]
  %s2 = inlined_call_operand.hbm [shape: f32[16,128], index: 2, kind: input, shape index: {}]
  %s3 = inlined_call_operand.hbm [shape: f32[128,128], index: 3, kind: input, shape index: {}]
  %s4 = inlined_call_operand.hbm [shape: f32[384,128], index: 4, kind: input, shape index: {}]
  %s5 = inlined_call_operand.hbm [shape: f32[16,128], index: 5, kind: output, shape index: {}]
  %s6 = sld [smem:[#allocation0]]
  $region50: #{tpu_custom_call.1} parent=0
    _
  %s8 = ssub.s32 1, %s6
  %s9 = scalar_select 0, %s8, %s6
  $region1: #{tpu_custom_call.1} parent=0
    #allocation2 [shape = 'u8[8192]{0}', space=vmem, size = 0x2000, scoped, tag = 'input window, operand 0, single buffered']
    #allocation3 [shape = 's32[1]{0}', space=sflag, size = 0x4, scoped, tag = 'scoped memory for tpu_custom_call.1']
    #allocation4 [shape = 's32[1]{0}', space=sflag, size = 0x4, scoped, tag = 'scoped memory for tpu_custom_call.1']
    #allocation5 [shape = 'u8[8192]{0}', space=vmem, size = 0x2000, scoped, tag = 'input window, operand 1, single buffered']
    #allocation6 [shape = 's32[1]{0}', space=sflag, size = 0x4, scoped, tag = 'scoped memory for tpu_custom_call.1']
    #allocation7 [shape = 'u8[8192]{0}', space=vmem, size = 0x2000, scoped, tag = 'input window, operand 2, single buffered']
    #allocation8 [shape = 'u8[65536]{0}', space=vmem, size = 0x10000, scoped, tag = 'input window, operand 3, single buffered']
    #allocation9 [shape = 's32[1]{0}', space=sflag, size = 0x4, scoped, tag = 'scoped memory for tpu_custom_call.1']
    #allocation10 [shape = 'u8[196608]{0}', space=vmem, size = 0x30000, scoped, tag = 'input window, operand 4, single buffered']
    #allocation11 [shape = 'u8[8192]{0}', space=vmem, size = 0x2000, scoped, tag = 'output window, operand 0, single buffered']
    %10 = vsyncpa [#allocation3], 0
    %11 = vsyncpa [#allocation6], 0
    %12 = vsyncpa [#allocation9], 0
    %13 = vsyncpa [#allocation4], 0
    // Predicated region
    $region2: #{tpu_custom_call.1} parent=1 // pred_check
      _
    $region3: #{tpu_custom_call.1} parent=1 // pred_check_branch
      %15 = sbr.rel (0) target = $region5
    $region4: #{tpu_custom_call.1} parent=1 // pred_region
      %s17 = ssub.s32 256, 256
      %18 = vsyncadd [#allocation3], %s17
      %s19 = sshll.u32 [#allocation2], 4
      %s20 = int_to_ptr.vmem [resolvable:$true] %s19
      %25 = dma.hbm_to_vmem [thread:$0]  %s0, 256, %s20, [#allocation3], 128, 128, 8
    $region5: #{tpu_custom_call.1} parent=1 // pred_fallthru
      _
    // Predicated region
    $region6: #{tpu_custom_call.1} parent=1 // pred_check
      _
    $region7: #{tpu_custom_call.1} parent=1 // pred_check_branch
      %27 = sbr.rel (0) target = $region9
    $region8: #{tpu_custom_call.1} parent=1 // pred_region
      %s29 = ssub.s32 256, 256
      %30 = vsyncadd [#allocation6], %s29
      %s31 = sshll.u32 [#allocation5], 4
      %s32 = int_to_ptr.vmem [resolvable:$true] %s31
      %37 = dma.hbm_to_vmem [thread:$0]  %s1, 256, %s32, [#allocation6], 128, 128, 8
    $region9: #{tpu_custom_call.1} parent=1 // pred_fallthru
      _
    // Predicated region
    $region10: #{tpu_custom_call.1} parent=1 // pred_check
      _
    $region11: #{tpu_custom_call.1} parent=1 // pred_check_branch
      %39 = sbr.rel (0) target = $region13
    $region12: #{tpu_custom_call.1} parent=1 // pred_region
      %s41 = ssub.s32 256, 256
      %42 = vsyncadd [#allocation6], %s41
      %s43 = sshll.u32 [#allocation7], 4
      %s44 = int_to_ptr.vmem [resolvable:$true] %s43
      %49 = dma.hbm_to_vmem [thread:$0]  %s2, 256, %s44, [#allocation6], 128, 128, 8
    $region13: #{tpu_custom_call.1} parent=1 // pred_fallthru
      _
    // Predicated region
    $region14: #{tpu_custom_call.1} parent=1 // pred_check
      _
    $region15: #{tpu_custom_call.1} parent=1 // pred_check_branch
      %51 = sbr.rel (0) target = $region17
    $region16: #{tpu_custom_call.1} parent=1 // pred_region
      %s53 = ssub.s32 2048, 2048
      %54 = vsyncadd [#allocation9], %s53
      %s55 = sshll.u32 [#allocation8], 4
      %s56 = int_to_ptr.vmem [resolvable:$true] %s55
      %61 = dma.hbm_to_vmem [thread:$0]  %s3, 2048, %s56, [#allocation9], 128, 128, 8
    $region17: #{tpu_custom_call.1} parent=1 // pred_fallthru
      _
    // Predicated region
    $region18: #{tpu_custom_call.1} parent=1 // pred_check
      _
    $region19: #{tpu_custom_call.1} parent=1 // pred_check_branch
      %63 = sbr.rel (0) target = $region21
    $region20: #{tpu_custom_call.1} parent=1 // pred_region
      %s65 = ssub.s32 6144, 6144
      %66 = vsyncadd [#allocation9], %s65
      %s67 = sshll.u32 [#allocation10], 4
      %s68 = int_to_ptr.vmem [resolvable:$true] %s67
      %73 = dma.hbm_to_vmem [thread:$0]  %s4, 6144, %s68, [#allocation9], 128, 128, 8
    $region21: #{tpu_custom_call.1} parent=1 // pred_fallthru
      _
    // Predicated region
    $region22: #{tpu_custom_call.1} parent=1 // pred_check
      _
    $region23: #{tpu_custom_call.1} parent=1 // pred_check_branch
      %75 = sbr.rel (0) target = $region25
    $region24: #{tpu_custom_call.1} parent=1 // pred_region
      %76 = dma.done [#allocation3], 256
    $region25: #{tpu_custom_call.1} parent=1 // pred_fallthru
      _
    // Predicated region
    $region26: #{tpu_custom_call.1} parent=1 // pred_check
      _
    $region27: #{tpu_custom_call.1} parent=1 // pred_check_branch
      %78 = sbr.rel (0) target = $region29
    $region28: #{tpu_custom_call.1} parent=1 // pred_region
      %79 = dma.done [#allocation6], 256
    $region29: #{tpu_custom_call.1} parent=1 // pred_fallthru
      _
    // Predicated region
    $region30: #{tpu_custom_call.1} parent=1 // pred_check
      _
    $region31: #{tpu_custom_call.1} parent=1 // pred_check_branch
      %81 = sbr.rel (0) target = $region33
    $region32: #{tpu_custom_call.1} parent=1 // pred_region
      %82 = dma.done [#allocation6], 256
    $region33: #{tpu_custom_call.1} parent=1 // pred_fallthru
      _
    // Predicated region
    $region34: #{tpu_custom_call.1} parent=1 // pred_check
      _
    $region35: #{tpu_custom_call.1} parent=1 // pred_check_branch
      %84 = sbr.rel (0) target = $region37
    $region36: #{tpu_custom_call.1} parent=1 // pred_region
      %85 = dma.done [#allocation9], 2048
    $region37: #{tpu_custom_call.1} parent=1 // pred_fallthru
      _
    // Predicated region
    $region38: #{tpu_custom_call.1} parent=1 // pred_check
      _
    $region39: #{tpu_custom_call.1} parent=1 // pred_check_branch
      %87 = sbr.rel (0) target = $region41
    $region40: #{tpu_custom_call.1} parent=1 // pred_region
      %88 = dma.done [#allocation9], 6144
    $region41: #{tpu_custom_call.1} parent=1 // pred_fallthru
      _
    %v89 = vld [vmem:[#allocation2] sm:$0xff]
    %v90 = vld [vmem:[#allocation2 + $0x8] sm:$0xff]
    %v91 = vld [vmem:[#allocation10] sm:$0xff]
    %v92 = vld [vmem:[#allocation10 + $0x8] sm:$0xff]
    %v93 = vld [vmem:[#allocation10 + $0x10] sm:$0xff]
    %v94 = vld [vmem:[#allocation10 + $0x18] sm:$0xff]
    %v95 = vld [vmem:[#allocation10 + $0x20] sm:$0xff]
    %v96 = vld [vmem:[#allocation10 + $0x28] sm:$0xff]
    %v97 = vld [vmem:[#allocation10 + $0x30] sm:$0xff]
    %v98 = vld [vmem:[#allocation10 + $0x38] sm:$0xff]
    %v99 = vld [vmem:[#allocation10 + $0x40] sm:$0xff]
    %v100 = vld [vmem:[#allocation10 + $0x48] sm:$0xff]
    %v101 = vld [vmem:[#allocation10 + $0x50] sm:$0xff]
    %v102 = vld [vmem:[#allocation10 + $0x58] sm:$0xff]
    %v103 = vld [vmem:[#allocation10 + $0x60] sm:$0xff]
    %v104 = vld [vmem:[#allocation10 + $0x68] sm:$0xff]
    %v105 = vld [vmem:[#allocation10 + $0x70] sm:$0xff]
    %v106 = vld [vmem:[#allocation10 + $0x78] sm:$0xff]
    %v107 = vld [vmem:[#allocation5] sm:$0xff]
    %v108 = vld [vmem:[#allocation5 + $0x8] sm:$0xff]
    %v109 = vld [vmem:[#allocation10 + $0x80] sm:$0xff]
    %v110 = vld [vmem:[#allocation10 + $0x88] sm:$0xff]
    %v111 = vld [vmem:[#allocation10 + $0x90] sm:$0xff]
    %v112 = vld [vmem:[#allocation10 + $0x98] sm:$0xff]
    %v113 = vld [vmem:[#allocation10 + $0xa0] sm:$0xff]
    %v114 = vld [vmem:[#allocation10 + $0xa8] sm:$0xff]
    %v115 = vld [vmem:[#allocation10 + $0xb0] sm:$0xff]
    %v116 = vld [vmem:[#allocation10 + $0xb8] sm:$0xff]
    %v117 = vld [vmem:[#allocation10 + $0xc0] sm:$0xff]
    %v118 = vld [vmem:[#allocation10 + $0xc8] sm:$0xff]
    %v119 = vld [vmem:[#allocation10 + $0xd0] sm:$0xff]
    %v120 = vld [vmem:[#allocation10 + $0xd8] sm:$0xff]
    %v121 = vld [vmem:[#allocation10 + $0xe0] sm:$0xff]
    %v122 = vld [vmem:[#allocation10 + $0xe8] sm:$0xff]
    %v123 = vld [vmem:[#allocation10 + $0xf0] sm:$0xff]
    %v124 = vld [vmem:[#allocation10 + $0xf8] sm:$0xff]
    %125 = vmatprep.subr.mxu0 0.0
    %126 = vmatpush1.msra.mxu0 %v109
    %127 = vmatprep.subr.mxu0 0.0
    %128 = vmatpush1.msra.mxu0 %v110
    %129 = vmatprep.subr.mxu0 0.0
    %130 = vmatpush1.msra.mxu0 %v111
    %131 = vmatprep.subr.mxu0 0.0
    %132 = vmatpush1.msra.mxu0 %v112
    %133 = vmatprep.subr.mxu0 0.0
    %134 = vmatpush1.msra.mxu0 %v113
    %135 = vmatprep.subr.mxu0 0.0
    %136 = vmatpush1.msra.mxu0 %v114
    %137 = vmatprep.subr.mxu0 0.0
    %138 = vmatpush1.msra.mxu0 %v115
    %139 = vmatprep.subr.mxu0 0.0
    %140 = vmatpush1.msra.mxu0 %v116
    %141 = vmatprep.subr.mxu0 0.0
    %142 = vmatpush1.msra.mxu0 %v117
    %143 = vmatprep.subr.mxu0 0.0
    %144 = vmatpush1.msra.mxu0 %v118
    %145 = vmatprep.subr.mxu0 0.0
    %146 = vmatpush1.msra.mxu0 %v119
    %147 = vmatprep.subr.mxu0 0.0
    %148 = vmatpush1.msra.mxu0 %v120
    %149 = vmatprep.subr.mxu0 0.0
    %150 = vmatpush1.msra.mxu0 %v121
    %151 = vmatprep.subr.mxu0 0.0
    %152 = vmatpush1.msra.mxu0 %v122
    %153 = vmatprep.subr.mxu0 0.0
    %154 = vmatpush1.msra.mxu0 %v123
    %155 = vmatprep.subr.mxu0 0.0
    %156 = vmatpush1.msra.mxu0 %v124
    %157 = vmatprep.subr.mxu0 0.0
    %158 = vmatpush1.msra.mxu0 0.0
    %159 = vmatprep.subr.mxu0 0.0
    %160 = vmatpush1.msra.mxu0 0.0
    %161 = vmatprep.subr.mxu0 0.0
    %162 = vmatpush1.msra.mxu0 0.0
    %163 = vmatprep.subr.mxu0 0.0
    %164 = vmatpush1.msra.mxu0 0.0
    %165 = vmatprep.subr.mxu0 0.0
    %166 = vmatpush1.msra.mxu0 0.0
    %167 = vmatprep.subr.mxu0 0.0
    %168 = vmatpush1.msra.mxu0 0.0
    %169 = vmatprep.subr.mxu0 0.0
    %170 = vmatpush1.msra.mxu0 0.0
    %171 = vmatprep.subr.mxu0 0.0
    %172 = vmatpush1.msra.mxu0 0.0
    %173 = vmatprep.subr.mxu0 0.0
    %174 = vmatpush1.msra.mxu0 0.0
    %175 = vmatprep.subr.mxu0 0.0
    %176 = vmatpush1.msra.mxu0 0.0
    %177 = vmatprep.subr.mxu0 0.0
    %178 = vmatpush1.msra.mxu0 0.0
    %179 = vmatprep.subr.mxu0 0.0
    %180 = vmatpush1.msra.mxu0 0.0
    %181 = vmatprep.subr.mxu0 0.0
    %182 = vmatpush1.msra.mxu0 0.0
    %183 = vmatprep.subr.mxu0 0.0
    %184 = vmatpush1.msra.mxu0 0.0
    %185 = vmatprep.subr.mxu0 0.0
    %186 = vmatpush1.msra.mxu0 0.0
    %187 = vmatprep.subr.mxu0 0.0
    %188 = vmatpush1.msra.mxu0 0.0
    %189 = vmatprep.mubr.f32.mxu0 0.0
    %190 = vmatmul.mubr.f32.gmra.mrb[0].mxu0 %v107
    %v191 = vpop.f32.mrb[0].mxu0
    %v192 = vadd.f32 0.0, %v191
    %v193 = vpop.f32.mrb[0].mxu0
    %194 = vmatprep.mubr.f32.mxu0 0.0
    %195 = vmatmul.mubr.f32.gmra.mrb[0].mxu0 %v108
    %v196 = vpop.f32.mrb[0].mxu0
    %v197 = vadd.f32 0.0, %v196
    %v198 = vpop.f32.mrb[0].mxu0
    %199 = vdwg.mxu0
    %200 = vmatprep.subr.mxu0 0.0
    %201 = vmatpush1.msra.mxu0 %v91
    %202 = vmatprep.subr.mxu0 0.0
    %203 = vmatpush1.msra.mxu0 %v92
    %204 = vmatprep.subr.mxu0 0.0
    %205 = vmatpush1.msra.mxu0 %v93
    %206 = vmatprep.subr.mxu0 0.0
    %207 = vmatpush1.msra.mxu0 %v94
    %208 = vmatprep.subr.mxu0 0.0
    %209 = vmatpush1.msra.mxu0 %v95
    %210 = vmatprep.subr.mxu0 0.0
    %211 = vmatpush1.msra.mxu0 %v96
    %212 = vmatprep.subr.mxu0 0.0
    %213 = vmatpush1.msra.mxu0 %v97
    %214 = vmatprep.subr.mxu0 0.0
    %215 = vmatpush1.msra.mxu0 %v98
    %216 = vmatprep.subr.mxu0 0.0
    %217 = vmatpush1.msra.mxu0 %v99
    %218 = vmatprep.subr.mxu0 0.0
    %219 = vmatpush1.msra.mxu0 %v100
    %220 = vmatprep.subr.mxu0 0.0
    %221 = vmatpush1.msra.mxu0 %v101
    %222 = vmatprep.subr.mxu0 0.0
    %223 = vmatpush1.msra.mxu0 %v102
    %224 = vmatprep.subr.mxu0 0.0
    %225 = vmatpush1.msra.mxu0 %v103
    %226 = vmatprep.subr.mxu0 0.0
    %227 = vmatpush1.msra.mxu0 %v104
    %228 = vmatprep.subr.mxu0 0.0
    %229 = vmatpush1.msra.mxu0 %v105
    %230 = vmatprep.subr.mxu0 0.0
    %231 = vmatpush1.msra.mxu0 %v106
    %232 = vmatprep.subr.mxu0 0.0
    %233 = vmatpush1.msra.mxu0 0.0
    %234 = vmatprep.subr.mxu0 0.0
    %235 = vmatpush1.msra.mxu0 0.0
    %236 = vmatprep.subr.mxu0 0.0
    %237 = vmatpush1.msra.mxu0 0.0
    %238 = vmatprep.subr.mxu0 0.0
    %239 = vmatpush1.msra.mxu0 0.0
    %240 = vmatprep.subr.mxu0 0.0
    %241 = vmatpush1.msra.mxu0 0.0
    %242 = vmatprep.subr.mxu0 0.0
    %243 = vmatpush1.msra.mxu0 0.0
    %244 = vmatprep.subr.mxu0 0.0
    %245 = vmatpush1.msra.mxu0 0.0
    %246 = vmatprep.subr.mxu0 0.0
    %247 = vmatpush1.msra.mxu0 0.0
    %248 = vmatprep.subr.mxu0 0.0
    %249 = vmatpush1.msra.mxu0 0.0
    %250 = vmatprep.subr.mxu0 0.0
    %251 = vmatpush1.msra.mxu0 0.0
    %252 = vmatprep.subr.mxu0 0.0
    %253 = vmatpush1.msra.mxu0 0.0
    %254 = vmatprep.subr.mxu0 0.0
    %255 = vmatpush1.msra.mxu0 0.0
    %256 = vmatprep.subr.mxu0 0.0
    %257 = vmatpush1.msra.mxu0 0.0
    %258 = vmatprep.subr.mxu0 0.0
    %259 = vmatpush1.msra.mxu0 0.0
    %260 = vmatprep.subr.mxu0 0.0
    %261 = vmatpush1.msra.mxu0 0.0
    %262 = vmatprep.subr.mxu0 0.0
    %263 = vmatpush1.msra.mxu0 0.0
    %264 = vmatprep.mubr.f32.mxu0 0.0
    %265 = vmatmul.mubr.f32.gmra.mrb[0].mxu0 %v89
    %v266 = vpop.f32.mrb[0].mxu0
    %v267 = vadd.f32 %v192, %v266
    %v268 = vpop.f32.mrb[0].mxu0
    %269 = vmatprep.mubr.f32.mxu0 0.0
    %270 = vmatmul.mubr.f32.gmra.mrb[0].mxu0 %v90
    %v271 = vpop.f32.mrb[0].mxu0
    %v272 = vadd.f32 %v197, %v271
    %v273 = vpop.f32.mrb[0].mxu0
    %274 = vdwg.mxu0
    %v275 = vld [vmem:[#allocation7] sm:$0xff]
    %v276 = vld [vmem:[#allocation7 + $0x8] sm:$0xff]
    %v277 = vld [vmem:[#allocation10 + $0x100] sm:$0xff]
    %v278 = vld [vmem:[#allocation10 + $0x108] sm:$0xff]
    %v279 = vld [vmem:[#allocation10 + $0x110] sm:$0xff]
    %v280 = vld [vmem:[#allocation10 + $0x118] sm:$0xff]
    %v281 = vld [vmem:[#allocation10 + $0x120] sm:$0xff]
    %v282 = vld [vmem:[#allocation10 + $0x128] sm:$0xff]
    %v283 = vld [vmem:[#allocation10 + $0x130] sm:$0xff]
    %v284 = vld [vmem:[#allocation10 + $0x138] sm:$0xff]
    %v285 = vld [vmem:[#allocation10 + $0x140] sm:$0xff]
    %v286 = vld [vmem:[#allocation10 + $0x148] sm:$0xff]
    %v287 = vld [vmem:[#allocation10 + $0x150] sm:$0xff]
    %v288 = vld [vmem:[#allocation10 + $0x158] sm:$0xff]
    %v289 = vld [vmem:[#allocation10 + $0x160] sm:$0xff]
    %v290 = vld [vmem:[#allocation10 + $0x168] sm:$0xff]
    %v291 = vld [vmem:[#allocation10 + $0x170] sm:$0xff]
    %v292 = vld [vmem:[#allocation10 + $0x178] sm:$0xff]
    %293 = vmatprep.subr.mxu0 0.0
    %294 = vmatpush1.msra.mxu0 %v277
    %295 = vmatprep.subr.mxu0 0.0
    %296 = vmatpush1.msra.mxu0 %v278
    %297 = vmatprep.subr.mxu0 0.0
    %298 = vmatpush1.msra.mxu0 %v279
    %299 = vmatprep.subr.mxu0 0.0
    %300 = vmatpush1.msra.mxu0 %v280
    %301 = vmatprep.subr.mxu0 0.0
    %302 = vmatpush1.msra.mxu0 %v281
    %303 = vmatprep.subr.mxu0 0.0
    %304 = vmatpush1.msra.mxu0 %v282
    %305 = vmatprep.subr.mxu0 0.0
    %306 = vmatpush1.msra.mxu0 %v283
    %307 = vmatprep.subr.mxu0 0.0
    %308 = vmatpush1.msra.mxu0 %v284
    %309 = vmatprep.subr.mxu0 0.0
    %310 = vmatpush1.msra.mxu0 %v285
    %311 = vmatprep.subr.mxu0 0.0
    %312 = vmatpush1.msra.mxu0 %v286
    %313 = vmatprep.subr.mxu0 0.0
    %314 = vmatpush1.msra.mxu0 %v287
    %315 = vmatprep.subr.mxu0 0.0
    %316 = vmatpush1.msra.mxu0 %v288
    %317 = vmatprep.subr.mxu0 0.0
    %318 = vmatpush1.msra.mxu0 %v289
    %319 = vmatprep.subr.mxu0 0.0
    %320 = vmatpush1.msra.mxu0 %v290
    %321 = vmatprep.subr.mxu0 0.0
    %322 = vmatpush1.msra.mxu0 %v291
    %323 = vmatprep.subr.mxu0 0.0
    %324 = vmatpush1.msra.mxu0 %v292
    %325 = vmatprep.subr.mxu0 0.0
    %326 = vmatpush1.msra.mxu0 0.0
    %327 = vmatprep.subr.mxu0 0.0
    %328 = vmatpush1.msra.mxu0 0.0
    %329 = vmatprep.subr.mxu0 0.0
    %330 = vmatpush1.msra.mxu0 0.0
    %331 = vmatprep.subr.mxu0 0.0
    %332 = vmatpush1.msra.mxu0 0.0
    %333 = vmatprep.subr.mxu0 0.0
    %334 = vmatpush1.msra.mxu0 0.0
    %335 = vmatprep.subr.mxu0 0.0
    %336 = vmatpush1.msra.mxu0 0.0
    %337 = vmatprep.subr.mxu0 0.0
    %338 = vmatpush1.msra.mxu0 0.0
    %339 = vmatprep.subr.mxu0 0.0
    %340 = vmatpush1.msra.mxu0 0.0
    %341 = vmatprep.subr.mxu0 0.0
    %342 = vmatpush1.msra.mxu0 0.0
    %343 = vmatprep.subr.mxu0 0.0
    %344 = vmatpush1.msra.mxu0 0.0
    %345 = vmatprep.subr.mxu0 0.0
    %346 = vmatpush1.msra.mxu0 0.0
    %347 = vmatprep.subr.mxu0 0.0
    %348 = vmatpush1.msra.mxu0 0.0
    %349 = vmatprep.subr.mxu0 0.0
    %350 = vmatpush1.msra.mxu0 0.0
    %351 = vmatprep.subr.mxu0 0.0
    %352 = vmatpush1.msra.mxu0 0.0
    %353 = vmatprep.subr.mxu0 0.0
    %354 = vmatpush1.msra.mxu0 0.0
    %355 = vmatprep.subr.mxu0 0.0
    %356 = vmatpush1.msra.mxu0 0.0
    %357 = vmatprep.mubr.f32.mxu0 0.0
    %358 = vmatmul.mubr.f32.gmra.mrb[0].mxu0 %v275
    %v359 = vpop.f32.mrb[0].mxu0
    %v360 = vadd.f32 0.0, %v359
    %v361 = vpop.f32.mrb[0].mxu0
    %362 = vmatprep.mubr.f32.mxu0 0.0
    %363 = vmatmul.mubr.f32.gmra.mrb[0].mxu0 %v276
    %v364 = vpop.f32.mrb[0].mxu0
    %v365 = vadd.f32 0.0, %v364
    %v366 = vpop.f32.mrb[0].mxu0
    %367 = vdwg.mxu0
    %v368 = vadd.f32 %v267, %v360
    %v369 = vadd.f32 %v272, %v365
    %v370 = vxor.u32 %v368, 2147483648
    %v371 = vxor.u32 %v369, 2147483648
    %v372 = vmul.f32 %v370, 1.442695
    %v373 = vpow.pop %v372
    %v374 = vmul.f32 %v371, 1.442695
    %v375 = vpow.pop %v374
    %v376 = vadd.f32 %v373, 1.0
    %v377 = vadd.f32 %v375, 1.0
    %v378 = vrcp.pop %v376
    %v379 = vmul.f32 1.0, %v378
    %v380 = vrcp.pop %v377
    %v381 = vmul.f32 1.0, %v380
    %v382 = vmul.f32 %v379, 1.442695
    %v383 = vpow.pop %v382
    %v384 = vmul.f32 %v381, 1.442695
    %v385 = vpow.pop %v384
    %vm386 = vcmask 23552
    %v387 = vsel %vm386, %v383, 0.0
    %388 = vadd.xlane.f32.xlu0 %v387
    %v389 = vpop.xlane.xlu0 %388
    %v390 = vsel %vm386, %v385, 0.0
    %391 = vadd.xlane.f32.xlu0 %v390
    %v392 = vpop.xlane.xlu0 %391
    %v393 = vrcp.pop %v389
    %v394 = vrcp.pop %v392
    %v395 = vmul.f32 %v389, %v393
    %v396 = vmul.f32 %v392, %v394
    %v397 = vsub.f32 2.0, %v395
    %v398 = vsub.f32 2.0, %v396
    %v399 = vmul.f32 %v393, %v397
    %v400 = vmul.f32 %v394, %v398
    %v401 = vmul.f32 %v383, %v399
    %v402 = vmul.f32 %v385, %v400
    %v403 = vld [vmem:[#allocation8] sm:$0xff]
    %v404 = vld [vmem:[#allocation8 + $0x8] sm:$0xff]
    %v405 = vld [vmem:[#allocation8 + $0x10] sm:$0xff]
    %v406 = vld [vmem:[#allocation8 + $0x18] sm:$0xff]
    %v407 = vld [vmem:[#allocation8 + $0x20] sm:$0xff]
    %v408 = vld [vmem:[#allocation8 + $0x28] sm:$0xff]
    %v409 = vld [vmem:[#allocation8 + $0x30] sm:$0xff]
    %v410 = vld [vmem:[#allocation8 + $0x38] sm:$0xff]
    %v411 = vld [vmem:[#allocation8 + $0x40] sm:$0xff]
    %v412 = vld [vmem:[#allocation8 + $0x48] sm:$0xff]
    %v413 = vld [vmem:[#allocation8 + $0x50] sm:$0xff]
    %v414 = vld [vmem:[#allocation8 + $0x58] sm:$0xff]
    %v415 = vld [vmem:[#allocation8 + $0x60] sm:$0xff]
    %v416 = vld [vmem:[#allocation8 + $0x68] sm:$0xff]
    %v417 = vld [vmem:[#allocation8 + $0x70] sm:$0xff]
    %v418 = vld [vmem:[#allocation8 + $0x78] sm:$0xff]
    %419 = vmatprep.subr.mxu0 0.0
    %420 = vmatpush1.msra.mxu0 %v403
    %421 = vmatprep.subr.mxu0 0.0
    %422 = vmatpush1.msra.mxu0 %v404
    %423 = vmatprep.subr.mxu0 0.0
    %424 = vmatpush1.msra.mxu0 %v405
    %425 = vmatprep.subr.mxu0 0.0
    %426 = vmatpush1.msra.mxu0 %v406
    %427 = vmatprep.subr.mxu0 0.0
    %428 = vmatpush1.msra.mxu0 %v407
    %429 = vmatprep.subr.mxu0 0.0
    %430 = vmatpush1.msra.mxu0 %v408
    %431 = vmatprep.subr.mxu0 0.0
    %432 = vmatpush1.msra.mxu0 %v409
    %433 = vmatprep.subr.mxu0 0.0
    %434 = vmatpush1.msra.mxu0 %v410
    %435 = vmatprep.subr.mxu0 0.0
    %436 = vmatpush1.msra.mxu0 %v411
    %437 = vmatprep.subr.mxu0 0.0
    %438 = vmatpush1.msra.mxu0 %v412
    %439 = vmatprep.subr.mxu0 0.0
    %440 = vmatpush1.msra.mxu0 %v413
    %441 = vmatprep.subr.mxu0 0.0
    %442 = vmatpush1.msra.mxu0 %v414
    %443 = vmatprep.subr.mxu0 0.0
    %444 = vmatpush1.msra.mxu0 %v415
    %445 = vmatprep.subr.mxu0 0.0
    %446 = vmatpush1.msra.mxu0 %v416
    %447 = vmatprep.subr.mxu0 0.0
    %448 = vmatpush1.msra.mxu0 %v417
    %449 = vmatprep.subr.mxu0 0.0
    %450 = vmatpush1.msra.mxu0 %v418
    %451 = vmatprep.subr.mxu0 0.0
    %452 = vmatpush1.msra.mxu0 0.0
    %453 = vmatprep.subr.mxu0 0.0
    %454 = vmatpush1.msra.mxu0 0.0
    %455 = vmatprep.subr.mxu0 0.0
    %456 = vmatpush1.msra.mxu0 0.0
    %457 = vmatprep.subr.mxu0 0.0
    %458 = vmatpush1.msra.mxu0 0.0
    %459 = vmatprep.subr.mxu0 0.0
    %460 = vmatpush1.msra.mxu0 0.0
    %461 = vmatprep.subr.mxu0 0.0
    %462 = vmatpush1.msra.mxu0 0.0
    %463 = vmatprep.subr.mxu0 0.0
    %464 = vmatpush1.msra.mxu0 0.0
    %465 = vmatprep.subr.mxu0 0.0
    %466 = vmatpush1.msra.mxu0 0.0
    %467 = vmatprep.subr.mxu0 0.0
    %468 = vmatpush1.msra.mxu0 0.0
    %469 = vmatprep.subr.mxu0 0.0
    %470 = vmatpush1.msra.mxu0 0.0
    %471 = vmatprep.subr.mxu0 0.0
    %472 = vmatpush1.msra.mxu0 0.0
    %473 = vmatprep.subr.mxu0 0.0
    %474 = vmatpush1.msra.mxu0 0.0
    %475 = vmatprep.subr.mxu0 0.0
    %476 = vmatpush1.msra.mxu0 0.0
    %477 = vmatprep.subr.mxu0 0.0
    %478 = vmatpush1.msra.mxu0 0.0
    %479 = vmatprep.subr.mxu0 0.0
    %480 = vmatpush1.msra.mxu0 0.0
    %481 = vmatprep.subr.mxu0 0.0
    %482 = vmatpush1.msra.mxu0 0.0
    %483 = vmatprep.mubr.f32.mxu0 0.0
    %484 = vmatmul.mubr.f32.gmra.mrb[0].mxu0 %v89
    %v485 = vpop.f32.mrb[0].mxu0
    %v486 = vadd.f32 0.0, %v485
    %v487 = vpop.f32.mrb[0].mxu0
    %488 = vmatprep.mubr.f32.mxu0 0.0
    %489 = vmatmul.mubr.f32.gmra.mrb[0].mxu0 %v90
    %v490 = vpop.f32.mrb[0].mxu0
    %v491 = vadd.f32 0.0, %v490
    %v492 = vpop.f32.mrb[0].mxu0
    %493 = vdwg.mxu0
    %v494 = vtanh.pop %v486
    %v495 = vtanh.pop %v491
    %v496 = vadd.f32 %v494, %v89
    %v497 = vadd.f32 %v495, %v90
    %499 = vset.pattern.permute.xlu0 0
    %500 = vperm.xlu0 %499, %v401
    %v501 = vpop.permute.xlu0 %500
    %504 = vset.pattern.permute.xlu0 0
    %505 = vperm.xlu0 %504, %v402
    %v506 = vpop.permute.xlu0 %505
    %v508 = vmul.f32 %v501, %v496
    %v509 = vmul.f32 %v506, %v497
    %510 = vmatprep.subr.mxu0 0.0
    %511 = vmatpush1.msra.mxu0 %v403
    %512 = vmatprep.subr.mxu0 0.0
    %513 = vmatpush1.msra.mxu0 %v404
    %514 = vmatprep.subr.mxu0 0.0
    %515 = vmatpush1.msra.mxu0 %v405
    %516 = vmatprep.subr.mxu0 0.0
    %517 = vmatpush1.msra.mxu0 %v406
    %518 = vmatprep.subr.mxu0 0.0
    %519 = vmatpush1.msra.mxu0 %v407
    %520 = vmatprep.subr.mxu0 0.0
    %521 = vmatpush1.msra.mxu0 %v408
    %522 = vmatprep.subr.mxu0 0.0
    %523 = vmatpush1.msra.mxu0 %v409
    %524 = vmatprep.subr.mxu0 0.0
    %525 = vmatpush1.msra.mxu0 %v410
    %526 = vmatprep.subr.mxu0 0.0
    %527 = vmatpush1.msra.mxu0 %v411
    %528 = vmatprep.subr.mxu0 0.0
    %529 = vmatpush1.msra.mxu0 %v412
    %530 = vmatprep.subr.mxu0 0.0
    %531 = vmatpush1.msra.mxu0 %v413
    %532 = vmatprep.subr.mxu0 0.0
    %533 = vmatpush1.msra.mxu0 %v414
    %534 = vmatprep.subr.mxu0 0.0
    %535 = vmatpush1.msra.mxu0 %v415
    %536 = vmatprep.subr.mxu0 0.0
    %537 = vmatpush1.msra.mxu0 %v416
    %538 = vmatprep.subr.mxu0 0.0
    %539 = vmatpush1.msra.mxu0 %v417
    %540 = vmatprep.subr.mxu0 0.0
    %541 = vmatpush1.msra.mxu0 %v418
    %542 = vmatprep.subr.mxu0 0.0
    %543 = vmatpush1.msra.mxu0 0.0
    %544 = vmatprep.subr.mxu0 0.0
    %545 = vmatpush1.msra.mxu0 0.0
    %546 = vmatprep.subr.mxu0 0.0
    %547 = vmatpush1.msra.mxu0 0.0
    %548 = vmatprep.subr.mxu0 0.0
    %549 = vmatpush1.msra.mxu0 0.0
    %550 = vmatprep.subr.mxu0 0.0
    %551 = vmatpush1.msra.mxu0 0.0
    %552 = vmatprep.subr.mxu0 0.0
    %553 = vmatpush1.msra.mxu0 0.0
    %554 = vmatprep.subr.mxu0 0.0
    %555 = vmatpush1.msra.mxu0 0.0
    %556 = vmatprep.subr.mxu0 0.0
    %557 = vmatpush1.msra.mxu0 0.0
    %558 = vmatprep.subr.mxu0 0.0
    %559 = vmatpush1.msra.mxu0 0.0
    %560 = vmatprep.subr.mxu0 0.0
    %561 = vmatpush1.msra.mxu0 0.0
    %562 = vmatprep.subr.mxu0 0.0
    %563 = vmatpush1.msra.mxu0 0.0
    %564 = vmatprep.subr.mxu0 0.0
    %565 = vmatpush1.msra.mxu0 0.0
    %566 = vmatprep.subr.mxu0 0.0
    %567 = vmatpush1.msra.mxu0 0.0
    %568 = vmatprep.subr.mxu0 0.0
    %569 = vmatpush1.msra.mxu0 0.0
    %570 = vmatprep.subr.mxu0 0.0
    %571 = vmatpush1.msra.mxu0 0.0
    %572 = vmatprep.subr.mxu0 0.0
    %573 = vmatpush1.msra.mxu0 0.0
    %574 = vmatprep.mubr.f32.mxu0 0.0
    %575 = vmatmul.mubr.f32.gmra.mrb[0].mxu0 %v107
    %v576 = vpop.f32.mrb[0].mxu0
    %v577 = vadd.f32 0.0, %v576
    %v578 = vpop.f32.mrb[0].mxu0
    %579 = vmatprep.mubr.f32.mxu0 0.0
    %580 = vmatmul.mubr.f32.gmra.mrb[0].mxu0 %v108
    %v581 = vpop.f32.mrb[0].mxu0
    %v582 = vadd.f32 0.0, %v581
    %v583 = vpop.f32.mrb[0].mxu0
    %584 = vdwg.mxu0
    %v585 = vtanh.pop %v577
    %v586 = vtanh.pop %v582
    %v587 = vadd.f32 %v585, %v107
    %v588 = vadd.f32 %v586, %v108
    %589 = vset.pattern.permute.xlu0 1
    %590 = vperm.xlu0 %589, %v401
    %v591 = vpop.permute.xlu0 %590
    %593 = vset.pattern.permute.xlu0 1
    %594 = vperm.xlu0 %593, %v402
    %v595 = vpop.permute.xlu0 %594
    %v597 = vmul.f32 %v591, %v587
    %v598 = vmul.f32 %v595, %v588
    %v599 = vadd.f32 %v508, %v597
    %v600 = vadd.f32 %v509, %v598
    %601 = vmatprep.subr.mxu0 0.0
    %602 = vmatpush1.msra.mxu0 %v403
    %603 = vmatprep.subr.mxu0 0.0
    %604 = vmatpush1.msra.mxu0 %v404
    %605 = vmatprep.subr.mxu0 0.0
    %606 = vmatpush1.msra.mxu0 %v405
    %607 = vmatprep.subr.mxu0 0.0
    %608 = vmatpush1.msra.mxu0 %v406
    %609 = vmatprep.subr.mxu0 0.0
    %610 = vmatpush1.msra.mxu0 %v407
    %611 = vmatprep.subr.mxu0 0.0
    %612 = vmatpush1.msra.mxu0 %v408
    %613 = vmatprep.subr.mxu0 0.0
    %614 = vmatpush1.msra.mxu0 %v409
    %615 = vmatprep.subr.mxu0 0.0
    %616 = vmatpush1.msra.mxu0 %v410
    %617 = vmatprep.subr.mxu0 0.0
    %618 = vmatpush1.msra.mxu0 %v411
    %619 = vmatprep.subr.mxu0 0.0
    %620 = vmatpush1.msra.mxu0 %v412
    %621 = vmatprep.subr.mxu0 0.0
    %622 = vmatpush1.msra.mxu0 %v413
    %623 = vmatprep.subr.mxu0 0.0
    %624 = vmatpush1.msra.mxu0 %v414
    %625 = vmatprep.subr.mxu0 0.0
    %626 = vmatpush1.msra.mxu0 %v415
    %627 = vmatprep.subr.mxu0 0.0
    %628 = vmatpush1.msra.mxu0 %v416
    %629 = vmatprep.subr.mxu0 0.0
    %630 = vmatpush1.msra.mxu0 %v417
    %631 = vmatprep.subr.mxu0 0.0
    %632 = vmatpush1.msra.mxu0 %v418
    %633 = vmatprep.subr.mxu0 0.0
    %634 = vmatpush1.msra.mxu0 0.0
    %635 = vmatprep.subr.mxu0 0.0
    %636 = vmatpush1.msra.mxu0 0.0
    %637 = vmatprep.subr.mxu0 0.0
    %638 = vmatpush1.msra.mxu0 0.0
    %639 = vmatprep.subr.mxu0 0.0
    %640 = vmatpush1.msra.mxu0 0.0
    %641 = vmatprep.subr.mxu0 0.0
    %642 = vmatpush1.msra.mxu0 0.0
    %643 = vmatprep.subr.mxu0 0.0
    %644 = vmatpush1.msra.mxu0 0.0
    %645 = vmatprep.subr.mxu0 0.0
    %646 = vmatpush1.msra.mxu0 0.0
    %647 = vmatprep.subr.mxu0 0.0
    %648 = vmatpush1.msra.mxu0 0.0
    %649 = vmatprep.subr.mxu0 0.0
    %650 = vmatpush1.msra.mxu0 0.0
    %651 = vmatprep.subr.mxu0 0.0
    %652 = vmatpush1.msra.mxu0 0.0
    %653 = vmatprep.subr.mxu0 0.0
    %654 = vmatpush1.msra.mxu0 0.0
    %655 = vmatprep.subr.mxu0 0.0
    %656 = vmatpush1.msra.mxu0 0.0
    %657 = vmatprep.subr.mxu0 0.0
    %658 = vmatpush1.msra.mxu0 0.0
    %659 = vmatprep.subr.mxu0 0.0
    %660 = vmatpush1.msra.mxu0 0.0
    %661 = vmatprep.subr.mxu0 0.0
    %662 = vmatpush1.msra.mxu0 0.0
    %663 = vmatprep.subr.mxu0 0.0
    %664 = vmatpush1.msra.mxu0 0.0
    %665 = vmatprep.mubr.f32.mxu0 0.0
    %666 = vmatmul.mubr.f32.gmra.mrb[0].mxu0 %v275
    %v667 = vpop.f32.mrb[0].mxu0
    %v668 = vadd.f32 0.0, %v667
    %v669 = vpop.f32.mrb[0].mxu0
    %670 = vmatprep.mubr.f32.mxu0 0.0
    %671 = vmatmul.mubr.f32.gmra.mrb[0].mxu0 %v276
    %v672 = vpop.f32.mrb[0].mxu0
    %v673 = vadd.f32 0.0, %v672
    %v674 = vpop.f32.mrb[0].mxu0
    %675 = vdwg.mxu0
    %v676 = vtanh.pop %v668
    %v677 = vtanh.pop %v673
    %v678 = vadd.f32 %v676, %v275
    %v679 = vadd.f32 %v677, %v276
    %680 = vset.pattern.permute.xlu0 2
    %681 = vperm.xlu0 %680, %v401
    %v682 = vpop.permute.xlu0 %681
    %684 = vset.pattern.permute.xlu0 2
    %685 = vperm.xlu0 %684, %v402
    %v686 = vpop.permute.xlu0 %685
    %v688 = vmul.f32 %v682, %v678
    %v689 = vmul.f32 %v686, %v679
    %v690 = vadd.f32 %v599, %v688
    %v691 = vadd.f32 %v600, %v689
    %692 = vst [vmem:[#allocation11] sm:$0xff] %v690
    %693 = vst [vmem:[#allocation11 + $0x8] sm:$0xff] %v691
    // Predicated region
    $region42: #{tpu_custom_call.1} parent=1 // pred_check
      _
    $region43: #{tpu_custom_call.1} parent=1 // pred_check_branch
      %695 = sbr.rel (0) target = $region45
    $region44: #{tpu_custom_call.1} parent=1 // pred_region
      %s697 = ssub.s32 256, 256
      %698 = vsyncadd [#allocation4], %s697
      %s699 = sshll.u32 [#allocation11], 4
      %s700 = int_to_ptr.vmem [resolvable:$true] %s699
      %705 = dma.vmem_to_hbm [thread:$0]  %s700, 256, %s5, [#allocation4], 128, 128, 8
    $region45: #{tpu_custom_call.1} parent=1 // pred_fallthru
      _
    // Predicated region
    $region46: #{tpu_custom_call.1} parent=1 // pred_check
      _
    $region47: #{tpu_custom_call.1} parent=1 // pred_check_branch
      %707 = sbr.rel (0) target = $region49
    $region48: #{tpu_custom_call.1} parent=1 // pred_region
      %708 = dma.done [#allocation4], 256
    $region49: #{tpu_custom_call.1} parent=1 // pred_fallthru
      _
    %709 = vsyncpa [#allocation3], 1
    %710 = vsyncpa [#allocation6], 1
    %711 = vsyncpa [#allocation9], 1
    %712 = vsyncpa [#allocation4], 1

</llo_original>
